<compile_context>
chip_gen: v5e
topology: v5e:2x2
jax: 0.10.0
libtpu: 0.0.40
codegen_flags: <defaults>
</compile_context>

<pallas_src>
import jax
import jax.numpy as jnp
from jax import lax
from jax.experimental import pallas as pl
from jax.experimental.pallas import tpu as pltpu

NEG_FILL = -99999.0


def _pick_block_b(B, N, H, itemsize, target_bytes, min_grid_steps=2):
    """How many batch elements per grid step (~target_bytes of `hidden` per step)."""
    per_b = max(1, N * H * itemsize)
    tb = max(1, int(target_bytes) // per_b)
    # Keep at least `min_grid_steps` grid steps (v7x megacore: both TCs get work) when the
    # batch is big enough that each step can still satisfy the multiple-of-8 constraint.
    if B >= 8 * min_grid_steps:
        tb = min(tb, pl.cdiv(B, min_grid_steps))
    if tb >= B:
        return B
    # (TB, H) / (TB, 1) blocks: when TB < B the sublane dim TB must be a multiple of 8.
    tb = max(8, (tb // 8) * 8)
    return B if tb >= B else tb


def _make_kernel(N, H, TB):
    def kernel(cc_ref, h_ref, val_ref, idx_ref):
        # cc_ref: (TB, 1) int32 block; h_ref: (TB, N, H) block.
        # val_ref / idx_ref: dense (TB, H) output slabs (written once per grid step).
        neg = jnp.asarray(NEG_FILL, h_ref.dtype)
        # Hoisted once per grid step: clamp counts (0 -> keep first node) and lane-broadcast.
        valid = jnp.broadcast_to(jnp.maximum(cc_ref[...], 1), (TB, H))  # (TB, H) int32

        def masked_node(n):
            x = h_ref[:, n, :]                       # (TB, H) slice at node n
            return jnp.where(valid > n, x, neg)      # exactly the torch -99999 fill semantics

        # Running max / argmax over the node axis, kept resident as dense (TB, H) values.
        run_max = masked_node(0)                     # node 0 is always valid (count clamped >= 1)
        run_arg = jnp.zeros((TB, H), jnp.int32)
        for n in range(1, N):
            xm = masked_node(n)
            better = xm > run_max                    # strict ">" => first max wins on ties
            run_max = jnp.where(better, xm, run_max)
            run_arg = jnp.where(better, jnp.int32(n), run_arg)

        col_ids = lax.broadcasted_iota(jnp.int32, (TB, H), 1)
        val_ref[...] = run_max.astype(val_ref.dtype)
        idx_ref[...] = run_arg * jnp.int32(H) + col_ids   # flat index into the (N, H) window

    return kernel


def maxpool_readout(hidden, child_counts, *, target_block_bytes=6 << 20):
    """hidden: [B, N, H] float; child_counts: [B] int -> (values [B,1,H], indices [B,1,1,H])."""
    B, N, H = hidden.shape
    assert N * H < 2**31, "flattened pool index must fit int32"
    itemsize = jnp.dtype(hidden.dtype).itemsize
    TB = _pick_block_b(B, N, H, itemsize, target_block_bytes)
    grid = (pl.cdiv(B, TB),)

    cc2d = child_counts.astype(jnp.int32).reshape(B, 1)

    # VMEM budget from the *actual* block bytes (after TB round-up): double-buffered input +
    # outputs + slack for the (TB, H) running max/argmax (spilled to VMEM when TB*H is large).
    in_block = TB * N * H * itemsize
    out_block = TB * H * (itemsize + 4)
    carry = TB * H * (itemsize + 4)
    vmem_needed = 2 * (in_block + out_block + TB * 4) + 4 * carry + (4 << 20)
    vmem_limit = max(int(vmem_needed), 32 << 20)   # 32 MiB fits every generation's physical VMEM

    grid_spec = pltpu.PrefetchScalarGridSpec(
        num_scalar_prefetch=0,
        grid=grid,
        in_specs=[
            pl.BlockSpec((TB, 1), lambda g: (g, 0)),        # child_counts
            pl.BlockSpec((TB, N, H), lambda g: (g, 0, 0)),  # hidden
        ],
        out_specs=[
            pl.BlockSpec((TB, H), lambda g: (g, 0)),        # values (dense slab)
            pl.BlockSpec((TB, H), lambda g: (g, 0)),        # indices (dense slab)
        ],
    )

    cost = pl.CostEstimate(
        flops=3 * B * N * H,          # compare/select work; this kernel is pure bandwidth
        transcendentals=0,
        bytes_accessed=B * N * H * itemsize + B * 4 + B * H * (itemsize + 4),
    )

    values, indices = pl.pallas_call(
        _make_kernel(N, H, TB),
        out_shape=(
            jax.ShapeDtypeStruct((B, H), hidden.dtype),
            jax.ShapeDtypeStruct((B, H), jnp.int32),
        ),
        grid_spec=grid_spec,
        compiler_params=pltpu.CompilerParams(
            dimension_semantics=("parallel",),
            vmem_limit_bytes=vmem_limit,
        ),
        cost_estimate=cost,
    )(cc2d, hidden)

    # Free layout plumbing: present the module's (B,1,H) / (B,1,1,H) shapes.
    return values[:, None, :], indices[:, None, None, :]


def _reference(hidden, child_counts):
    """Pure-JAX reference matching the PyTorch forward."""
    B, N, H = hidden.shape
    valid = jnp.maximum(child_counts, 1)
    mask = jnp.arange(N)[None, :, None] < valid[:, None, None]
    masked = jnp.where(mask, hidden, NEG_FILL)
    values = masked.max(axis=1, keepdims=True)                     # (B, 1, H)
    argnode = jnp.argmax(masked, axis=1)                           # (B, H), first max
    idx = argnode * H + jnp.arange(H)[None, :]
    return values, idx[:, None, None, :].astype(jnp.int32)         # (B, 1, 1, H)


def _check(B, N, H, key, target_block_bytes=6 << 20):
    khid, kcnt = jax.random.split(key)
    hidden = jax.random.normal(khid, (B, N, H), dtype=jnp.float32)
    child_counts = jax.random.randint(kcnt, (B,), 0, N + 1, dtype=jnp.int32)

    vals, idxs = maxpool_readout(hidden, child_counts,
                                 target_block_bytes=target_block_bytes)
    jax.block_until_ready((vals, idxs))

    ref_vals, ref_idxs = _reference(hidden, child_counts)
    assert vals.shape == (B, 1, H) and idxs.shape == (B, 1, 1, H)
    assert jnp.allclose(vals, ref_vals), "value mismatch"
    assert jnp.array_equal(idxs, ref_idxs), "index mismatch"


if __name__ == "__main__":
    key = jax.random.PRNGKey(0)
    k0, k1, k2 = jax.random.split(key, 3)

    # Small shape consistent with the module, including the c_count == 0 edge case.
    B, N, H = 2, 8, 32
    hidden = jax.random.normal(k0, (B, N, H), dtype=jnp.float32)
    child_counts = jnp.array([0, 3], dtype=jnp.int32)
    vals, idxs = maxpool_readout(hidden, child_counts)
    jax.block_until_ready((vals, idxs))
    ref_vals, ref_idxs = _reference(hidden, child_counts)
    assert vals.shape == (B, 1, H) and idxs.shape == (B, 1, 1, H)
    assert jnp.allclose(vals, ref_vals), "value mismatch"
    assert jnp.array_equal(idxs, ref_idxs), "index mismatch"

    # Multi-block grid path with a partial last block (B=20, TB=8 -> grid 3, last block 4 rows).
    _check(20, 8, 128, k1, target_block_bytes=8 * 8 * 128 * 4)

    # Default block sizing with the >=2-grid-steps split for the megacore (B=16 -> TB=8, grid 2).
    _check(16, 8, 32, k2)

    print("KERNEL_OK")
</pallas_src>

<mosaic_0001>
module attributes {stable_mosaic.version = 11 : i64} {
  func.func @kernel(%arg0: i32, %arg1: memref<2x1xi32, #tpu.memory_space<vmem>>, %arg2: memref<2x8x32xf32, #tpu.memory_space<vmem>>, %arg3: memref<2x32xf32, #tpu.memory_space<vmem>>, %arg4: memref<2x32xi32, #tpu.memory_space<vmem>>) attributes {dimension_semantics = [#tpu.dimension_semantics<parallel>], iteration_bounds = array<i64: 1>, scalar_prefetch = 0 : i64, scratch_operands = 0 : i64, tpu.core_type = #tpu.core_type<tc>, window_params = [{transform_indices = @transform_0, window_bounds = array<i64: 2, 1>}, {transform_indices = @transform_1, window_bounds = array<i64: 2, 8, 32>}, {transform_indices = @transform_2, window_bounds = array<i64: 2, 32>}, {transform_indices = @transform_3, window_bounds = array<i64: 2, 32>}]} {
    %c0 = arith.constant 0 : index
    %c0_0 = arith.constant 0 : index
    %0 = vector.load %arg1[%c0, %c0_0] : memref<2x1xi32, #tpu.memory_space<vmem>>, vector<2x1xi32>
    %c1_i32 = arith.constant 1 : i32
    %1 = vector.broadcast %c1_i32 : i32 to vector<2x1xi32>
    %2 = arith.maxsi %0, %1 : vector<2x1xi32>
    %3 = vector.shape_cast %2 : vector<2x1xi32> to vector<2x1xi32>
    %4 = vector.broadcast %3 : vector<2x1xi32> to vector<2x32xi32>
    %c0_1 = arith.constant 0 : index
    %c0_2 = arith.constant 0 : index
    %c0_3 = arith.constant 0 : index
    %5 = vector.load %arg2[%c0_1, %c0_2, %c0_3] : memref<2x8x32xf32, #tpu.memory_space<vmem>>, vector<2x1x32xf32>
    %6 = vector.shape_cast %5 : vector<2x1x32xf32> to vector<2x32xf32>
    %c0_i32 = arith.constant 0 : i32
    %7 = vector.broadcast %c0_i32 : i32 to vector<2x32xi32>
    %8 = arith.cmpi sgt, %4, %7 : vector<2x32xi32>
    %cst = arith.constant -9.999900e+04 : f32
    %9 = vector.broadcast %cst : f32 to vector<2x32xf32>
    %10 = arith.select %8, %6, %9 : vector<2x32xi1>, vector<2x32xf32>
    %c0_i32_4 = arith.constant 0 : i32
    %11 = vector.broadcast %c0_i32_4 : i32 to vector<2x32xi32>
    %c0_5 = arith.constant 0 : index
    %c1 = arith.constant 1 : index
    %c0_6 = arith.constant 0 : index
    %12 = vector.load %arg2[%c0_5, %c1, %c0_6] : memref<2x8x32xf32, #tpu.memory_space<vmem>>, vector<2x1x32xf32>
    %13 = vector.shape_cast %12 : vector<2x1x32xf32> to vector<2x32xf32>
    %c1_i32_7 = arith.constant 1 : i32
    %14 = vector.broadcast %c1_i32_7 : i32 to vector<2x32xi32>
    %15 = arith.cmpi sgt, %4, %14 : vector<2x32xi32>
    %cst_8 = arith.constant -9.999900e+04 : f32
    %16 = vector.broadcast %cst_8 : f32 to vector<2x32xf32>
    %17 = arith.select %15, %13, %16 : vector<2x32xi1>, vector<2x32xf32>
    %18 = arith.cmpf ogt, %17, %10 : vector<2x32xf32>
    %19 = arith.select %18, %17, %10 : vector<2x32xi1>, vector<2x32xf32>
    %c1_i32_9 = arith.constant 1 : i32
    %20 = vector.broadcast %c1_i32_9 : i32 to vector<2x32xi32>
    %21 = arith.select %18, %20, %11 : vector<2x32xi1>, vector<2x32xi32>
    %c0_10 = arith.constant 0 : index
    %c2 = arith.constant 2 : index
    %c0_11 = arith.constant 0 : index
    %22 = vector.load %arg2[%c0_10, %c2, %c0_11] : memref<2x8x32xf32, #tpu.memory_space<vmem>>, vector<2x1x32xf32>
    %23 = vector.shape_cast %22 : vector<2x1x32xf32> to vector<2x32xf32>
    %c2_i32 = arith.constant 2 : i32
    %24 = vector.broadcast %c2_i32 : i32 to vector<2x32xi32>
    %25 = arith.cmpi sgt, %4, %24 : vector<2x32xi32>
    %cst_12 = arith.constant -9.999900e+04 : f32
    %26 = vector.broadcast %cst_12 : f32 to vector<2x32xf32>
    %27 = arith.select %25, %23, %26 : vector<2x32xi1>, vector<2x32xf32>
    %28 = arith.cmpf ogt, %27, %19 : vector<2x32xf32>
    %29 = arith.select %28, %27, %19 : vector<2x32xi1>, vector<2x32xf32>
    %c2_i32_13 = arith.constant 2 : i32
    %30 = vector.broadcast %c2_i32_13 : i32 to vector<2x32xi32>
    %31 = arith.select %28, %30, %21 : vector<2x32xi1>, vector<2x32xi32>
    %c0_14 = arith.constant 0 : index
    %c3 = arith.constant 3 : index
    %c0_15 = arith.constant 0 : index
    %32 = vector.load %arg2[%c0_14, %c3, %c0_15] : memref<2x8x32xf32, #tpu.memory_space<vmem>>, vector<2x1x32xf32>
    %33 = vector.shape_cast %32 : vector<2x1x32xf32> to vector<2x32xf32>
    %c3_i32 = arith.constant 3 : i32
    %34 = vector.broadcast %c3_i32 : i32 to vector<2x32xi32>
    %35 = arith.cmpi sgt, %4, %34 : vector<2x32xi32>
    %cst_16 = arith.constant -9.999900e+04 : f32
    %36 = vector.broadcast %cst_16 : f32 to vector<2x32xf32>
    %37 = arith.select %35, %33, %36 : vector<2x32xi1>, vector<2x32xf32>
    %38 = arith.cmpf ogt, %37, %29 : vector<2x32xf32>
    %39 = arith.select %38, %37, %29 : vector<2x32xi1>, vector<2x32xf32>
    %c3_i32_17 = arith.constant 3 : i32
    %40 = vector.broadcast %c3_i32_17 : i32 to vector<2x32xi32>
    %41 = arith.select %38, %40, %31 : vector<2x32xi1>, vector<2x32xi32>
    %c0_18 = arith.constant 0 : index
    %c4 = arith.constant 4 : index
    %c0_19 = arith.constant 0 : index
    %42 = vector.load %arg2[%c0_18, %c4, %c0_19] : memref<2x8x32xf32, #tpu.memory_space<vmem>>, vector<2x1x32xf32>
    %43 = vector.shape_cast %42 : vector<2x1x32xf32> to vector<2x32xf32>
    %c4_i32 = arith.constant 4 : i32
    %44 = vector.broadcast %c4_i32 : i32 to vector<2x32xi32>
    %45 = arith.cmpi sgt, %4, %44 : vector<2x32xi32>
    %cst_20 = arith.constant -9.999900e+04 : f32
    %46 = vector.broadcast %cst_20 : f32 to vector<2x32xf32>
    %47 = arith.select %45, %43, %46 : vector<2x32xi1>, vector<2x32xf32>
    %48 = arith.cmpf ogt, %47, %39 : vector<2x32xf32>
    %49 = arith.select %48, %47, %39 : vector<2x32xi1>, vector<2x32xf32>
    %c4_i32_21 = arith.constant 4 : i32
    %50 = vector.broadcast %c4_i32_21 : i32 to vector<2x32xi32>
    %51 = arith.select %48, %50, %41 : vector<2x32xi1>, vector<2x32xi32>
    %c0_22 = arith.constant 0 : index
    %c5 = arith.constant 5 : index
    %c0_23 = arith.constant 0 : index
    %52 = vector.load %arg2[%c0_22, %c5, %c0_23] : memref<2x8x32xf32, #tpu.memory_space<vmem>>, vector<2x1x32xf32>
    %53 = vector.shape_cast %52 : vector<2x1x32xf32> to vector<2x32xf32>
    %c5_i32 = arith.constant 5 : i32
    %54 = vector.broadcast %c5_i32 : i32 to vector<2x32xi32>
    %55 = arith.cmpi sgt, %4, %54 : vector<2x32xi32>
    %cst_24 = arith.constant -9.999900e+04 : f32
    %56 = vector.broadcast %cst_24 : f32 to vector<2x32xf32>
    %57 = arith.select %55, %53, %56 : vector<2x32xi1>, vector<2x32xf32>
    %58 = arith.cmpf ogt, %57, %49 : vector<2x32xf32>
    %59 = arith.select %58, %57, %49 : vector<2x32xi1>, vector<2x32xf32>
    %c5_i32_25 = arith.constant 5 : i32
    %60 = vector.broadcast %c5_i32_25 : i32 to vector<2x32xi32>
    %61 = arith.select %58, %60, %51 : vector<2x32xi1>, vector<2x32xi32>
    %c0_26 = arith.constant 0 : index
    %c6 = arith.constant 6 : index
    %c0_27 = arith.constant 0 : index
    %62 = vector.load %arg2[%c0_26, %c6, %c0_27] : memref<2x8x32xf32, #tpu.memory_space<vmem>>, vector<2x1x32xf32>
    %63 = vector.shape_cast %62 : vector<2x1x32xf32> to vector<2x32xf32>
    %c6_i32 = arith.constant 6 : i32
    %64 = vector.broadcast %c6_i32 : i32 to vector<2x32xi32>
    %65 = arith.cmpi sgt, %4, %64 : vector<2x32xi32>
    %cst_28 = arith.constant -9.999900e+04 : f32
    %66 = vector.broadcast %cst_28 : f32 to vector<2x32xf32>
    %67 = arith.select %65, %63, %66 : vector<2x32xi1>, vector<2x32xf32>
    %68 = arith.cmpf ogt, %67, %59 : vector<2x32xf32>
    %69 = arith.select %68, %67, %59 : vector<2x32xi1>, vector<2x32xf32>
    %c6_i32_29 = arith.constant 6 : i32
    %70 = vector.broadcast %c6_i32_29 : i32 to vector<2x32xi32>
    %71 = arith.select %68, %70, %61 : vector<2x32xi1>, vector<2x32xi32>
    %c0_30 = arith.constant 0 : index
    %c7 = arith.constant 7 : index
    %c0_31 = arith.constant 0 : index
    %72 = vector.load %arg2[%c0_30, %c7, %c0_31] : memref<2x8x32xf32, #tpu.memory_space<vmem>>, vector<2x1x32xf32>
    %73 = vector.shape_cast %72 : vector<2x1x32xf32> to vector<2x32xf32>
    %c7_i32 = arith.constant 7 : i32
    %74 = vector.broadcast %c7_i32 : i32 to vector<2x32xi32>
    %75 = arith.cmpi sgt, %4, %74 : vector<2x32xi32>
    %cst_32 = arith.constant -9.999900e+04 : f32
    %76 = vector.broadcast %cst_32 : f32 to vector<2x32xf32>
    %77 = arith.select %75, %73, %76 : vector<2x32xi1>, vector<2x32xf32>
    %78 = arith.cmpf ogt, %77, %69 : vector<2x32xf32>
    %79 = arith.select %78, %77, %69 : vector<2x32xi1>, vector<2x32xf32>
    %c7_i32_33 = arith.constant 7 : i32
    %80 = vector.broadcast %c7_i32_33 : i32 to vector<2x32xi32>
    %81 = arith.select %78, %80, %71 : vector<2x32xi1>, vector<2x32xi32>
    %82 = tpu.iota {dimensions = array<i32: 1>} : vector<2x32xi32>
    %c0_34 = arith.constant 0 : index
    %c0_35 = arith.constant 0 : index
    %83 = vector.load %arg3[%c0_34, %c0_35] : memref<2x32xf32, #tpu.memory_space<vmem>>, vector<2x32xf32>
    tpu.vector_store %arg3[%c0_34, %c0_35], %79 {strides = array<i32>} : memref<2x32xf32, #tpu.memory_space<vmem>>, vector<2x32xf32>,
    %c32_i32 = arith.constant 32 : i32
    %84 = vector.broadcast %c32_i32 : i32 to vector<2x32xi32>
    %85 = arith.muli %81, %84 : vector<2x32xi32>
    %86 = arith.addi %85, %82 : vector<2x32xi32>
    %c0_36 = arith.constant 0 : index
    %c0_37 = arith.constant 0 : index
    %87 = vector.load %arg4[%c0_36, %c0_37] : memref<2x32xi32, #tpu.memory_space<vmem>>, vector<2x32xi32>
    tpu.vector_store %arg4[%c0_36, %c0_37], %86 {strides = array<i32>} : memref<2x32xi32, #tpu.memory_space<vmem>>, vector<2x32xi32>,
    return
  }
  func.func @transform_0(%arg0: i32) -> (i32, i32) {
    %c0_i32 = arith.constant 0 : i32
    %c0_i32_0 = arith.constant 0 : i32
    return %arg0, %c0_i32 : i32, i32
  }
  func.func @transform_1(%arg0: i32) -> (i32, i32, i32) {
    %c0_i32 = arith.constant 0 : i32
    %c0_i32_0 = arith.constant 0 : i32
    %c0_i32_1 = arith.constant 0 : i32
    return %arg0, %c0_i32, %c0_i32_0 : i32, i32, i32
  }
  func.func @transform_2(%arg0: i32) -> (i32, i32) {
    %c0_i32 = arith.constant 0 : i32
    %c0_i32_0 = arith.constant 0 : i32
    return %arg0, %c0_i32 : i32, i32
  }
  func.func @transform_3(%arg0: i32) -> (i32, i32) {
    %c0_i32 = arith.constant 0 : i32
    %c0_i32_0 = arith.constant 0 : i32
    return %arg0, %c0_i32 : i32, i32
  }
}

</mosaic_0001>

<llo_original>
// kernel: tpu_custom_call.1
$region0: #{tpu_custom_call.1}
  #allocation0 [shape = 'u32[]', space=smem, size = 0x4, offset = 0x4, fixed_abs, tag = 'smem constant byte address 0x4 - core index']
  #allocation1 [shape = 'u32[72,128]{1,0:T(1,128)}', space=vmem, size = 0x9000, scoped, tag = 'internal scratch']
  %s0 = inlined_call_operand.vmem [shape: s32[2,1], index: 0, kind: input, shape index: {}]
  %s1 = inlined_call_operand.hbm [shape: f32[2,8,32], index: 1, kind: input, shape index: {}]
  %s2 = inlined_call_operand.hbm [shape: f32[2,32], index: 2, kind: output, shape index: {0}]
  %s3 = inlined_call_operand.hbm [shape: s32[2,32], index: 3, kind: output, shape index: {1}]
  %4 = xla_tuple %s2, %s3
  %s5 = sld [smem:[#allocation0]]
  $region30: #{tpu_custom_call.1} parent=0
    _
  %s7 = ssub.s32 1, %s5
  %s8 = scalar_select 0, %s7, %s5
  $region1: #{tpu_custom_call.1} parent=0
    #allocation2 [shape = 'u8[8192]{0}', space=vmem, size = 0x2000, scoped, tag = 'input window, operand 1, single buffered']
    #allocation3 [shape = 's32[1]{0}', space=sflag, size = 0x4, scoped, tag = 'scoped memory for tpu_custom_call.1']
    #allocation4 [shape = 's32[1]{0}', space=sflag, size = 0x4, scoped, tag = 'scoped memory for tpu_custom_call.1']
    #allocation5 [shape = 'u8[1024]{0}', space=vmem, size = 0x400, scoped, tag = 'output window, operand 0, single buffered']
    #allocation6 [shape = 'u8[1024]{0}', space=vmem, size = 0x400, scoped, tag = 'output window, operand 1, single buffered']
    #allocation7 [shape = 's32[1]{0}', space=sflag, size = 0x4, scoped, tag = 'scoped memory for tpu_custom_call.1']
    %9 = vsyncpa [#allocation3], 0
    %10 = vsyncpa [#allocation4], 0
    %11 = vsyncpa [#allocation7], 0
    // Predicated region
    $region2: #{tpu_custom_call.1} parent=1 // pred_check
      _
    $region3: #{tpu_custom_call.1} parent=1 // pred_check_branch
      %13 = sbr.rel (0) target = $region5
    $region4: #{tpu_custom_call.1} parent=1 // pred_region
      _
    $region5: #{tpu_custom_call.1} parent=1 // pred_fallthru
      _
    // Predicated region
    $region6: #{tpu_custom_call.1} parent=1 // pred_check
      _
    $region7: #{tpu_custom_call.1} parent=1 // pred_check_branch
      %15 = sbr.rel (0) target = $region9
    $region8: #{tpu_custom_call.1} parent=1 // pred_region
      %17 = vsyncadd [#allocation3], 0
      %s18 = sshll.u32 %s1, 4
      %s19 = int_to_ptr.hbm [resolvable:$true] %s18
      %s20 = sshll.u32 [#allocation2], 4
      %s21 = int_to_ptr.vmem [resolvable:$true] %s20
      %26 = dma.hbm_to_vmem [thread:$0]  %s19, 256, %s21, [#allocation3], 128, 128, 8
    $region9: #{tpu_custom_call.1} parent=1 // pred_fallthru
      _
    // Predicated region
    $region10: #{tpu_custom_call.1} parent=1 // pred_check
      _
    $region11: #{tpu_custom_call.1} parent=1 // pred_check_branch
      %28 = sbr.rel (0) target = $region13
    $region12: #{tpu_custom_call.1} parent=1 // pred_region
      %30 = dma.done [#allocation3], 256
    $region13: #{tpu_custom_call.1} parent=1 // pred_fallthru
      _
    %v31 = vld [vmem:[%s0] sm:$0x3]
    %vm32 = vcmp.gt.s32.totalorder %v31, 1
    %v33 = vsel %vm32, %v31, 1
    %34 = vset.pattern.permute.xlu0 0
    %35 = vperm.xlu0 %34, %v33
    %v36 = vpop.permute.xlu0 %35
    %v37 = vld [vmem:[#allocation2] sm:$0x1]
    %v38 = vld [vmem:[#allocation2 + $0x8] sm:$0x1]
    %vm39 = vcmp.gt.s32.totalorder %v36, 0
    %v42 = vrot.slane %v38, 7
    %vm43 = vcmask 1041409
    %v44 = vsel %vm43, %v42, %v37
    %v46 = vsel %vm39, %v44, -99999.0
    %v47 = vld [vmem:[#allocation2 + $0x1] sm:$0x1]
    %v48 = vld [vmem:[#allocation2 + $0x9] sm:$0x1]
    %vm49 = vcmp.gt.s32.totalorder %v36, 1
    %v52 = vrot.slane %v48, 7
    %v53 = vsel %vm43, %v52, %v47
    %v55 = vsel %vm49, %v53, -99999.0
    %vm56 = vcmp.gt.f32.partialorder %v55, %v46
    %v57 = vsel %vm56, %v55, %v46
    %v58 = vsel %vm56, 1, 0
    %v59 = vld [vmem:[#allocation2 + $0x2] sm:$0x1]
    %v60 = vld [vmem:[#allocation2 + $0xa] sm:$0x1]
    %vm61 = vcmp.gt.s32.totalorder %v36, 2
    %v64 = vrot.slane %v60, 7
    %v65 = vsel %vm43, %v64, %v59
    %v67 = vsel %vm61, %v65, -99999.0
    %vm68 = vcmp.gt.f32.partialorder %v67, %v57
    %v69 = vsel %vm68, %v67, %v57
    %v70 = vsel %vm68, 2, %v58
    %v71 = vld [vmem:[#allocation2 + $0x3] sm:$0x1]
    %v72 = vld [vmem:[#allocation2 + $0xb] sm:$0x1]
    %vm73 = vcmp.gt.s32.totalorder %v36, 3
    %v76 = vrot.slane %v72, 7
    %v77 = vsel %vm43, %v76, %v71
    %v79 = vsel %vm73, %v77, -99999.0
    %vm80 = vcmp.gt.f32.partialorder %v79, %v69
    %v81 = vsel %vm80, %v79, %v69
    %v82 = vsel %vm80, 3, %v70
    %v83 = vld [vmem:[#allocation2 + $0x4] sm:$0x1]
    %v84 = vld [vmem:[#allocation2 + $0xc] sm:$0x1]
    %vm85 = vcmp.gt.s32.totalorder %v36, 4
    %v88 = vrot.slane %v84, 7
    %v89 = vsel %vm43, %v88, %v83
    %v91 = vsel %vm85, %v89, -99999.0
    %vm92 = vcmp.gt.f32.partialorder %v91, %v81
    %v93 = vsel %vm92, %v91, %v81
    %v94 = vsel %vm92, 4, %v82
    %v95 = vld [vmem:[#allocation2 + $0x5] sm:$0x1]
    %v96 = vld [vmem:[#allocation2 + $0xd] sm:$0x1]
    %vm97 = vcmp.gt.s32.totalorder %v36, 5
    %v100 = vrot.slane %v96, 7
    %v101 = vsel %vm43, %v100, %v95
    %v103 = vsel %vm97, %v101, -99999.0
    %vm104 = vcmp.gt.f32.partialorder %v103, %v93
    %v105 = vsel %vm104, %v103, %v93
    %v106 = vsel %vm104, 5, %v94
    %v107 = vld [vmem:[#allocation2 + $0x6] sm:$0x1]
    %v108 = vld [vmem:[#allocation2 + $0xe] sm:$0x1]
    %vm109 = vcmp.gt.s32.totalorder %v36, 6
    %v112 = vrot.slane %v108, 7
    %v113 = vsel %vm43, %v112, %v107
    %v115 = vsel %vm109, %v113, -99999.0
    %vm116 = vcmp.gt.f32.partialorder %v115, %v105
    %v117 = vsel %vm116, %v115, %v105
    %v118 = vsel %vm116, 6, %v106
    %v119 = vld [vmem:[#allocation2 + $0x7] sm:$0x1]
    %v120 = vld [vmem:[#allocation2 + $0xf] sm:$0x1]
    %vm121 = vcmp.gt.s32.totalorder %v36, 7
    %v124 = vrot.slane %v120, 7
    %v125 = vsel %vm43, %v124, %v119
    %v127 = vsel %vm121, %v125, -99999.0
    %vm128 = vcmp.gt.f32.partialorder %v127, %v117
    %v129 = vsel %vm128, %v127, %v117
    %v130 = vsel %vm128, 7, %v118
    %v131 = vlaneseq
    %v132 = vand.u32 %v131, 127
    %vm133 = vcmask 254976
    %134 = vst.msk [vmem:[#allocation5] sm:$0x3] %vm133, %v129
    %v135 = vmul.u32 %v130, 32
    %v136 = vadd.s32 %v135, %v132
    %137 = vst.msk [vmem:[#allocation6] sm:$0x3] %vm133, %v136
    // Predicated region
    $region14: #{tpu_custom_call.1} parent=1 // pred_check
      _
    $region15: #{tpu_custom_call.1} parent=1 // pred_check_branch
      %139 = sbr.rel (0) target = $region17
    $region16: #{tpu_custom_call.1} parent=1 // pred_region
      %141 = vsyncadd [#allocation4], 0
      %s143 = sshll.u32 [#allocation5], 4
      %s144 = int_to_ptr.vmem [resolvable:$true] %s143
      %s145 = sshll.u32 %s2, 4
      %s146 = int_to_ptr.hbm [resolvable:$true] %s145
      %148 = dma.vmem_to_hbm [thread:$0]  %s144, 32, %s146, [#allocation4]
    $region17: #{tpu_custom_call.1} parent=1 // pred_fallthru
      _
    // Predicated region
    $region18: #{tpu_custom_call.1} parent=1 // pred_check
      _
    $region19: #{tpu_custom_call.1} parent=1 // pred_check_branch
      %150 = sbr.rel (0) target = $region21
    $region20: #{tpu_custom_call.1} parent=1 // pred_region
      %152 = vsyncadd [#allocation7], 0
      %s154 = sshll.u32 [#allocation6], 4
      %s155 = int_to_ptr.vmem [resolvable:$true] %s154
      %s156 = sshll.u32 %s3, 4
      %s157 = int_to_ptr.hbm [resolvable:$true] %s156
      %159 = dma.vmem_to_hbm [thread:$0]  %s155, 32, %s157, [#allocation7]
    $region21: #{tpu_custom_call.1} parent=1 // pred_fallthru
      _
    // Predicated region
    $region22: #{tpu_custom_call.1} parent=1 // pred_check
      _
    $region23: #{tpu_custom_call.1} parent=1 // pred_check_branch
      %161 = sbr.rel (0) target = $region25
    $region24: #{tpu_custom_call.1} parent=1 // pred_region
      %163 = dma.done [#allocation4], 32
    $region25: #{tpu_custom_call.1} parent=1 // pred_fallthru
      _
    // Predicated region
    $region26: #{tpu_custom_call.1} parent=1 // pred_check
      _
    $region27: #{tpu_custom_call.1} parent=1 // pred_check_branch
      %165 = sbr.rel (0) target = $region29
    $region28: #{tpu_custom_call.1} parent=1 // pred_region
      %167 = dma.done [#allocation7], 32
    $region29: #{tpu_custom_call.1} parent=1 // pred_fallthru
      _
    %168 = vsyncpa [#allocation3], 1
    %169 = vsyncpa [#allocation4], 1
    %170 = vsyncpa [#allocation7], 1

</llo_original>
